<compile_context>
chip_gen: v5e
topology: v5e:2x2
jax: 0.10.0
libtpu: 0.0.40
codegen_flags: <defaults>
</compile_context>

<pallas_src>
import jax
import jax.numpy as jnp
from jax.experimental import pallas as pl
from jax.experimental.pallas import tpu as pltpu


def _learner_kernel(x_ref, t_ref, w_ref, o_ref, p_ref):
    # x_ref : (1, 1, TB)  f32   batch on lanes, streamed per block
    # t_ref : (TB, C)     targets tile in native dtype (bf16 or f32), streamed
    # w_ref : (3, C)      rows = [w_hi, w_lo, ones] in the targets dtype, resident
    # o_ref : (1, 1, TB)  f32   unnormalized output slab (scaled in the XLA epilogue)
    # p_ref : (1, 8, 128) f32   per-block partials: row 0 = sum(wo), row 1 = sum(targets)
    t = t_ref[...]                                            # native dtype, no f32 copy
    w3 = w_ref[...]

    # Single MXU matmul (bf16 x bf16 -> f32 acc when targets are bf16), lane-dense out:
    #   rows[0] + rows[1] = logits  (hi+lo split of the f32 weight -> ~f32 precision)
    #   rows[2]           = per-sample sum_c targets[b, c]   (fused "ones" row)
    rows = jnp.einsum("oc,bc->ob", w3, t,
                      preferred_element_type=jnp.float32)     # (3, TB) f32
    wo = jax.nn.sigmoid(rows[0:1, :] + rows[1:2, :])          # (1, TB)

    o_ref[0] = wo * x_ref[0]                                  # unnormalized; scaled later

    swo = jnp.sum(wo)                                         # scalar partial sums
    st = jnp.sum(rows[2:3, :])
    row_id = jax.lax.broadcasted_iota(jnp.int32, p_ref.shape, 1)
    p_ref[...] = jnp.where(row_id == 0, swo, jnp.where(row_id == 1, st, 0.0))


def _pick_block_b(B, C, itemsize):
    """Largest lane-aligned batch tile that divides B and keeps the double-buffered
    streamed blocks inside a conservative, generation-aware VMEM budget.  Large
    candidates amortize the ~0.35 us per-grid-step fixed cost (important for small C)."""
    try:
        vmem_bytes = int(pltpu.get_tpu_info().vmem_capacity_bytes)
    except Exception:
        vmem_bytes = 64 << 20                      # v7x-safe default
    budget = min(vmem_bytes // 4, 24 << 20)
    for cand in (8192, 4096, 2048, 1024, 512, 256, 128):
        # 2x double-buffered: targets tile (C*itemsize per row) + x/out rows (8 B per elem)
        if B % cand == 0 and 2 * cand * (C * itemsize + 8) <= budget:
            return cand
    # Fallback: single full block (no padded rows ever enter the global sums).
    # TODO(synk): the VMEM budget is not enforced on this fallback path (only matters
    # for extremely large C with a non-128-divisible B).
    return 128 if B % 128 == 0 else B


def learner_forward(x, targets, weight, block_b=None):
    """x: (B,), targets: (B, C) float (bf16 or f32), weight: (1, C) f32 (PyTorch layout).

    Returns (B,) float32, matching Learner.forward.
    """
    B, C = targets.shape
    t_dtype = targets.dtype
    itemsize = jnp.dtype(t_dtype).itemsize
    if block_b is None:
        block_b = _pick_block_b(B, C, itemsize)
    assert B % block_b == 0, "block_b must divide B"
    nb = B // block_b

    x3 = x.astype(jnp.float32).reshape(nb, 1, block_b)        # lane-dense batch blocks

    # Split the f32 weight into hi+lo parts in the targets dtype so the MXU runs a
    # native matmul on the streamed tile (no f32 copy of targets), while keeping
    # ~f32 logit precision.  A third row of ones fuses sum(targets) into the same matmul.
    w_f32 = weight.astype(jnp.float32).reshape(1, C)
    w_hi = w_f32.astype(t_dtype)
    w_lo = (w_f32 - w_hi.astype(jnp.float32)).astype(t_dtype)
    ones = jnp.ones((1, C), dtype=t_dtype)
    w3 = jnp.concatenate([w_hi, w_lo, ones], axis=0)          # (3, C)

    # Explicit, v7x-safe scoped-VMEM limit sized from the real streamed footprint.
    footprint = 2 * block_b * (C * itemsize + 8) + 2 * 8 * 128 * 4 + 3 * C * 4
    vmem_limit = int(min(max(2 * footprint + (4 << 20), 32 << 20), 48 << 20))

    grid_spec = pltpu.PrefetchScalarGridSpec(
        num_scalar_prefetch=0,
        grid=(nb,),
        in_specs=[
            pl.BlockSpec((1, 1, block_b), lambda i: (i, 0, 0)),   # x: streamed
            pl.BlockSpec((block_b, C), lambda i: (i, 0)),         # targets: streamed
            pl.BlockSpec((3, C), lambda i: (0, 0)),               # [w_hi, w_lo, 1]: resident
        ],
        out_specs=[
            pl.BlockSpec((1, 1, block_b), lambda i: (i, 0, 0)),   # unnormalized out
            pl.BlockSpec((1, 8, 128), lambda i: (i, 0, 0)),       # per-block partial sums
        ],
    )

    out_u, partials = pl.pallas_call(
        _learner_kernel,
        out_shape=[
            jax.ShapeDtypeStruct((nb, 1, block_b), jnp.float32),
            jax.ShapeDtypeStruct((nb, 8, 128), jnp.float32),
        ],
        grid_spec=grid_spec,
        compiler_params=pltpu.CompilerParams(
            # Carry-free grid -> safe to shard batch blocks across TensorCores.
            dimension_semantics=("parallel",),
            vmem_limit_bytes=vmem_limit,
        ),
    )(x3, targets, w3)

    # Global renorm as a tiny scalar epilogue (fuses under the caller's jit); keeping it
    # out of the kernel is what lets the batch grid axis run "parallel".
    sum_wo = jnp.sum(partials[:, 0, 0])
    sum_t = jnp.sum(partials[:, 1, 0])
    return out_u.reshape(B) * (sum_t / sum_wo)


def reference_forward(x, targets, weight):
    t = targets.astype(jnp.float32)
    wo = jax.nn.sigmoid(t @ weight.astype(jnp.float32).T)[:, 0]
    out = wo * x.astype(jnp.float32)
    return out / wo.sum() * t.sum()


if __name__ == "__main__":
    key = jax.random.PRNGKey(0)
    B, C = 256, 16  # small demo sizes

    kx, kt, kw = jax.random.split(key, 3)
    x = jax.random.normal(kx, (B,), dtype=jnp.float32)
    labels = jax.random.randint(kt, (B,), 0, C)
    targets_bf16 = jax.nn.one_hot(labels, C, dtype=jnp.bfloat16)  # exact in bf16
    targets_f32 = jax.nn.one_hot(labels, C, dtype=jnp.float32)

    # nn.Linear(num_classes, 1, bias=False) with constant_(weight, 0): shape (1, C), zeros.
    w_zero = jnp.zeros((1, C), dtype=jnp.float32)
    out0 = learner_forward(x, targets_bf16, w_zero, block_b=128)   # multi-block path
    jax.block_until_ready(out0)
    ref0 = reference_forward(x, targets_bf16, w_zero)
    assert jnp.allclose(out0, ref0, atol=1e-5, rtol=1e-5), (out0, ref0)

    # Non-trivial weight: exercises sigmoid, hi/lo weight split and the global renorm.
    w_rand = 0.1 * jax.random.normal(kw, (1, C), dtype=jnp.float32)
    out1 = learner_forward(x, targets_bf16, w_rand)                # auto block_b path
    jax.block_until_ready(out1)
    ref1 = reference_forward(x, targets_bf16, w_rand)
    assert jnp.allclose(out1, ref1, atol=1e-5, rtol=1e-5), (out1, ref1)

    # f32 targets path (matches the PyTorch module's targets.float() exactly).
    out2 = learner_forward(x, targets_f32, w_rand, block_b=128)
    jax.block_until_ready(out2)
    ref2 = reference_forward(x, targets_f32, w_rand)
    assert jnp.allclose(out2, ref2, atol=1e-5, rtol=1e-5), (out2, ref2)

    print("KERNEL_OK")
</pallas_src>

<mosaic_0001>
module attributes {stable_mosaic.version = 11 : i64} {
  func.func @_learner_kernel(%arg0: i32, %arg1: memref<1x1x128xf32, #tpu.memory_space<vmem>>, %arg2: memref<128x16xbf16, #tpu.memory_space<vmem>>, %arg3: memref<3x16xbf16, #tpu.memory_space<vmem>>, %arg4: memref<1x1x128xf32, #tpu.memory_space<vmem>>, %arg5: memref<1x8x128xf32, #tpu.memory_space<vmem>>) attributes {dimension_semantics = [#tpu.dimension_semantics<parallel>], iteration_bounds = array<i64: 2>, scalar_prefetch = 0 : i64, scratch_operands = 0 : i64, tpu.core_type = #tpu.core_type<tc>, window_params = [{transform_indices = @transform_0, window_bounds = array<i64: 1, 1, 128>}, {transform_indices = @transform_1, window_bounds = array<i64: 128, 16>}, {pipeline_mode = #tpu.pipeline_mode<synchronous>, transform_indices = @transform_2, window_bounds = array<i64: 3, 16>}, {transform_indices = @transform_3, window_bounds = array<i64: 1, 1, 128>}, {transform_indices = @transform_4, window_bounds = array<i64: 1, 8, 128>}]} {
    %c0 = arith.constant 0 : index
    %c0_0 = arith.constant 0 : index
    %0 = vector.load %arg2[%c0, %c0_0] : memref<128x16xbf16, #tpu.memory_space<vmem>>, vector<128x16xbf16>
    %c0_1 = arith.constant 0 : index
    %c0_2 = arith.constant 0 : index
    %1 = vector.load %arg3[%c0_1, %c0_2] : memref<3x16xbf16, #tpu.memory_space<vmem>>, vector<3x16xbf16>
    "tpu.trace_start"() <{level = 10 : i32, message = "oc,bc->ob"}> : () -> ()
    %cst = arith.constant dense<0.000000e+00> : vector<3x128xf32>
    %2 = tpu.matmul %1, %0, %cst {dimension_numbers = #tpu.dot_dimension_numbers<[1], [1], [0], [0], [0, 0, 1, 0], [], []>} : vector<3x16xbf16>, vector<128x16xbf16>, vector<3x128xf32> -> vector<3x128xf32>
    "tpu.trace_stop"() : () -> ()
    %3 = vector.extract_strided_slice %2 {offsets = [0, 0], sizes = [1, 128], strides = [1, 1]} : vector<3x128xf32> to vector<1x128xf32>
    %4 = vector.extract_strided_slice %2 {offsets = [1, 0], sizes = [1, 128], strides = [1, 1]} : vector<3x128xf32> to vector<1x128xf32>
    %5 = arith.addf %3, %4 : vector<1x128xf32>
    %6 = arith.negf %5 : vector<1x128xf32>
    %7 = math.exp %6 : vector<1x128xf32>
    %cst_3 = arith.constant 1.000000e+00 : f32
    %8 = vector.broadcast %cst_3 : f32 to vector<1x128xf32>
    %9 = arith.addf %8, %7 : vector<1x128xf32>
    %10 = arith.divf %8, %9 : vector<1x128xf32>
    %c0_4 = arith.constant 0 : index
    %c0_5 = arith.constant 0 : index
    %c0_6 = arith.constant 0 : index
    %11 = vector.load %arg1[%c0_4, %c0_5, %c0_6] : memref<1x1x128xf32, #tpu.memory_space<vmem>>, vector<1x1x128xf32>
    %12 = vector.shape_cast %11 : vector<1x1x128xf32> to vector<1x128xf32>
    %13 = arith.mulf %10, %12 : vector<1x128xf32>
    %c0_7 = arith.constant 0 : index
    %c0_8 = arith.constant 0 : index
    %c0_9 = arith.constant 0 : index
    %14 = vector.load %arg4[%c0_7, %c0_8, %c0_9] : memref<1x1x128xf32, #tpu.memory_space<vmem>>, vector<1x1x128xf32>
    %15 = vector.shape_cast %14 : vector<1x1x128xf32> to vector<1x128xf32>
    %16 = vector.shape_cast %13 : vector<1x128xf32> to vector<1x1x128xf32>
    tpu.vector_store %arg4[%c0_7, %c0_8, %c0_9], %16 {strides = array<i32>} : memref<1x1x128xf32, #tpu.memory_space<vmem>>, vector<1x1x128xf32>,
    %17 = vector.shape_cast %10 : vector<1x128xf32> to vector<1x1x128xf32>
    %cst_10 = arith.constant dense<0.000000e+00> : vector<1xf32>
    %18 = vector.multi_reduction <add>, %17, %cst_10 [1, 2] : vector<1x1x128xf32> to vector<1xf32>
    %19 = vector.shape_cast %18 : vector<1xf32> to vector<1x1x1xf32>
    %20 = vector.extract %19[0, 0, 0] : f32 from vector<1x1x1xf32>
    %21 = vector.extract_strided_slice %2 {offsets = [2, 0], sizes = [1, 128], strides = [1, 1]} : vector<3x128xf32> to vector<1x128xf32>
    %22 = vector.shape_cast %21 : vector<1x128xf32> to vector<1x1x128xf32>
    %cst_11 = arith.constant dense<0.000000e+00> : vector<1xf32>
    %23 = vector.multi_reduction <add>, %22, %cst_11 [1, 2] : vector<1x1x128xf32> to vector<1xf32>
    %24 = vector.shape_cast %23 : vector<1xf32> to vector<1x1x1xf32>
    %25 = vector.extract %24[0, 0, 0] : f32 from vector<1x1x1xf32>
    %26 = tpu.iota {dimensions = array<i32: 1>} : vector<1x8x128xi32>
    %c0_i32 = arith.constant 0 : i32
    %27 = vector.broadcast %c0_i32 : i32 to vector<1x8x128xi32>
    %28 = arith.cmpi eq, %26, %27 : vector<1x8x128xi32>
    %c1_i32 = arith.constant 1 : i32
    %29 = vector.broadcast %c1_i32 : i32 to vector<1x8x128xi32>
    %30 = arith.cmpi eq, %26, %29 : vector<1x8x128xi32>
    %cst_12 = arith.constant 0.000000e+00 : f32
    %31 = vector.broadcast %25 : f32 to vector<1x8x128xf32>
    %32 = vector.broadcast %cst_12 : f32 to vector<1x8x128xf32>
    %33 = arith.select %30, %31, %32 : vector<1x8x128xi1>, vector<1x8x128xf32>
    %34 = vector.broadcast %20 : f32 to vector<1x8x128xf32>
    %35 = arith.select %28, %34, %33 : vector<1x8x128xi1>, vector<1x8x128xf32>
    %c0_13 = arith.constant 0 : index
    %c0_14 = arith.constant 0 : index
    %c0_15 = arith.constant 0 : index
    %36 = vector.load %arg5[%c0_13, %c0_14, %c0_15] : memref<1x8x128xf32, #tpu.memory_space<vmem>>, vector<1x8x128xf32>
    tpu.vector_store %arg5[%c0_13, %c0_14, %c0_15], %35 {strides = array<i32>} : memref<1x8x128xf32, #tpu.memory_space<vmem>>, vector<1x8x128xf32>,
    return
  }
  func.func @transform_0(%arg0: i32) -> (i32, i32, i32) {
    %c0_i32 = arith.constant 0 : i32
    %c0_i32_0 = arith.constant 0 : i32
    %c0_i32_1 = arith.constant 0 : i32
    return %arg0, %c0_i32, %c0_i32_0 : i32, i32, i32
  }
  func.func @transform_1(%arg0: i32) -> (i32, i32) {
    %c0_i32 = arith.constant 0 : i32
    %c0_i32_0 = arith.constant 0 : i32
    return %arg0, %c0_i32 : i32, i32
  }
  func.func @transform_2(%arg0: i32) -> (i32, i32) {
    %c0_i32 = arith.constant 0 : i32
    %c0_i32_0 = arith.constant 0 : i32
    %c0_i32_1 = arith.constant 0 : i32
    return %c0_i32, %c0_i32_0 : i32, i32
  }
  func.func @transform_3(%arg0: i32) -> (i32, i32, i32) {
    %c0_i32 = arith.constant 0 : i32
    %c0_i32_0 = arith.constant 0 : i32
    %c0_i32_1 = arith.constant 0 : i32
    return %arg0, %c0_i32, %c0_i32_0 : i32, i32, i32
  }
  func.func @transform_4(%arg0: i32) -> (i32, i32, i32) {
    %c0_i32 = arith.constant 0 : i32
    %c0_i32_0 = arith.constant 0 : i32
    %c0_i32_1 = arith.constant 0 : i32
    return %arg0, %c0_i32, %c0_i32_0 : i32, i32, i32
  }
}

</mosaic_0001>

<llo_original>
// kernel: tpu_custom_call.1
$region0: #{tpu_custom_call.1}
  #allocation0 [shape = 'u32[]', space=smem, size = 0x4, offset = 0x4, fixed_abs, tag = 'smem constant byte address 0x4 - core index']
  #allocation1 [shape = 'u32[72,128]{1,0:T(1,128)}', space=vmem, size = 0x9000, scoped, tag = 'internal scratch']
  %s0 = inlined_call_operand.vmem [shape: f32[2,1,128], index: 0, kind: input, shape index: {}]
  %s1 = inlined_call_operand.vmem [shape: bf16[256,16], index: 1, kind: input, shape index: {}]
  %s2 = inlined_call_operand.vmem [shape: bf16[3,16], index: 2, kind: input, shape index: {}]
  %s3 = inlined_call_operand.hbm [shape: f32[2,1,128], index: 3, kind: output, shape index: {0}]
  %s4 = inlined_call_operand.hbm [shape: f32[2,8,128], index: 4, kind: output, shape index: {1}]
  %5 = xla_tuple %s3, %s4
  %s6 = sld [smem:[#allocation0]]
  $region53: #{tpu_custom_call.1} parent=0
    _
  %s8 = ssub.s32 1, %s6
  %s9 = scalar_select 0, %s8, %s6
  $region1: #{tpu_custom_call.1} parent=0
    #allocation2 [shape = 'u8[1024]{0}', space=vmem, size = 0x400, scoped, tag = 'output window, operand 0']
    #allocation3 [shape = 's32[2]{0}', space=sflag, size = 0x8, scoped, tag = 'scoped memory for tpu_custom_call.1']
    #allocation4 [shape = 'u8[8192]{0}', space=vmem, size = 0x2000, scoped, tag = 'output window, operand 1']
    #allocation5 [shape = 's32[2]{0}', space=sflag, size = 0x8, scoped, tag = 'scoped memory for tpu_custom_call.1']
    %10 = vsyncpa [#allocation3], 0
    %s11 = scalar_lea.sflag [#allocation3], 1
    %12 = vsyncpa %s11, 0
    %13 = vsyncpa [#allocation5], 0
    %s14 = scalar_lea.sflag [#allocation5], 1
    %15 = vsyncpa %s14, 0
    loop: start=0, step=1, limit=4
    $region2: #{tpu_custom_call.1} parent=1 // loop_pre_header
      _
    $region3: #{tpu_custom_call.1} parent=1 // loop_header
      %s17 = sphi 0, %s21
      %p18 = scmp.ge.s32.totalorder %s17, 4
      %s27 = sphi 0, %s29
      %s30 = sphi 0, %s27
      %s31 = sphi 0, %s30
      %s47 = sphi 0, %s31
      %s53 = sphi 0, %s55
      %s56 = sphi 0, %s53
      %s57 = sphi 0, %s56
      %s73 = sphi 0, %s57
      %s77 = sphi 0, %s77
      %s79 = sphi 0, %s77
      %s80 = sphi 0, %s79
      %s94 = sphi 0, %s80
      %s100 = sphi 0, %s102
      %s103 = sphi 0, %s100
      %s104 = sphi 0, %s103
      %s120 = sphi 0, %s104
      %s126 = sphi 0, %s128
      %s129 = sphi 0, %s126
      %s130 = sphi 0, %s129
      %s146 = sphi 0, %s130
    $region4: #{tpu_custom_call.1} parent=1 // loop_header_branch
      %20 = sbr.rel (%p18) target = $region8
    $region5: #{tpu_custom_call.1} parent=1 // loop_body
      %s22 = ssub.s32 %s17, 1
      %s23 = ssub.s32 %s17, 2
      %s24 = sadd.s32 %s17, 1
      %s25 = ssub.s32 %s17, %s24
      %p26 = scmp.eq.s32.totalorder %s25, 0
      %s28 = sadd.s32 %s27, 1
      %s29 = scalar_select %p26, %s27, %s28
      %p32 = pneg %p26
      %p33 = scmp.eq.s32.totalorder %s17, 1
      %p34 = por %p32, %p33
      %p35 = scmp.ne.s32.totalorder %s27, %s30
      %p36 = scmp.eq.s32.totalorder %s17, 0
      %p37 = por %p35, %p36
      %p38 = scmp.ne.s32.totalorder %s27, %s30
      %p39 = scmp.eq.s32.totalorder %s22, 1
      %p40 = por %p38, %p39
      %p41 = scmp.ne.s32.totalorder %s30, %s31
      %p42 = scmp.eq.s32.totalorder %s22, 0
      %p43 = por %p41, %p42
      %p44 = scmp.ne.s32.totalorder %s30, %s31
      %p45 = scmp.eq.s32.totalorder %s23, 1
      %p46 = por %p44, %p45
      %p48 = scmp.ne.s32.totalorder %s31, %s47
      %p49 = scmp.eq.s32.totalorder %s23, 0
      %p50 = por %p48, %p49
      %s51 = ssub.s32 %s17, %s24
      %p52 = scmp.eq.s32.totalorder %s51, 0
      %s54 = sadd.s32 %s53, 1
      %s55 = scalar_select %p52, %s53, %s54
      %p58 = pneg %p52
      %p59 = scmp.eq.s32.totalorder %s17, 1
      %p60 = por %p58, %p59
      %p61 = scmp.ne.s32.totalorder %s53, %s56
      %p62 = scmp.eq.s32.totalorder %s17, 0
      %p63 = por %p61, %p62
      %p64 = scmp.ne.s32.totalorder %s53, %s56
      %p65 = scmp.eq.s32.totalorder %s22, 1
      %p66 = por %p64, %p65
      %p67 = scmp.ne.s32.totalorder %s56, %s57
      %p68 = scmp.eq.s32.totalorder %s22, 0
      %p69 = por %p67, %p68
      %p70 = scmp.ne.s32.totalorder %s56, %s57
      %p71 = scmp.eq.s32.totalorder %s23, 1
      %p72 = por %p70, %p71
      %p74 = scmp.ne.s32.totalorder %s57, %s73
      %p75 = scmp.eq.s32.totalorder %s23, 0
      %p76 = por %p74, %p75
      %s78 = sadd.s32 %s77, 1
      %p81 = scmp.eq.s32.totalorder %s17, 1
      %p82 = scmp.ne.s32.totalorder %s77, %s79
      %p83 = scmp.eq.s32.totalorder %s17, 0
      %p84 = por %p82, %p83
      %p85 = scmp.ne.s32.totalorder %s77, %s79
      %p86 = scmp.eq.s32.totalorder %s22, 1
      %p87 = por %p85, %p86
      %p88 = scmp.ne.s32.totalorder %s79, %s80
      %p89 = scmp.eq.s32.totalorder %s22, 0
      %p90 = por %p88, %p89
      %p91 = scmp.ne.s32.totalorder %s79, %s80
      %p92 = scmp.eq.s32.totalorder %s23, 1
      %p93 = por %p91, %p92
      %p95 = scmp.ne.s32.totalorder %s80, %s94
      %p96 = scmp.eq.s32.totalorder %s23, 0
      %p97 = por %p95, %p96
      %s98 = ssub.s32 %s17, %s24
      %p99 = scmp.eq.s32.totalorder %s98, 0
      %s101 = sadd.s32 %s100, 1
      %s102 = scalar_select %p99, %s100, %s101
      %p105 = pneg %p99
      %p106 = scmp.eq.s32.totalorder %s17, 1
      %p107 = por %p105, %p106
      %p108 = scmp.ne.s32.totalorder %s100, %s103
      %p109 = scmp.eq.s32.totalorder %s17, 0
      %p110 = por %p108, %p109
      %p111 = scmp.ne.s32.totalorder %s100, %s103
      %p112 = scmp.eq.s32.totalorder %s22, 1
      %p113 = por %p111, %p112
      %p114 = scmp.ne.s32.totalorder %s103, %s104
      %p115 = scmp.eq.s32.totalorder %s22, 0
      %p116 = por %p114, %p115
      %p117 = scmp.ne.s32.totalorder %s103, %s104
      %p118 = scmp.eq.s32.totalorder %s23, 1
      %p119 = por %p117, %p118
      %p121 = scmp.ne.s32.totalorder %s104, %s120
      %p122 = scmp.eq.s32.totalorder %s23, 0
      %p123 = por %p121, %p122
      %s124 = ssub.s32 %s17, %s24
      %p125 = scmp.eq.s32.totalorder %s124, 0
      %s127 = sadd.s32 %s126, 1
      %s128 = scalar_select %p125, %s126, %s127
      %p131 = pneg %p125
      %p132 = scmp.eq.s32.totalorder %s17, 1
      %p133 = por %p131, %p132
      %p134 = scmp.ne.s32.totalorder %s126, %s129
      %p135 = scmp.eq.s32.totalorder %s17, 0
      %p136 = por %p134, %p135
      %p137 = scmp.ne.s32.totalorder %s126, %s129
      %p138 = scmp.eq.s32.totalorder %s22, 1
      %p139 = por %p137, %p138
      %p140 = scmp.ne.s32.totalorder %s129, %s130
      %p141 = scmp.eq.s32.totalorder %s22, 0
      %p142 = por %p140, %p141
      %p143 = scmp.ne.s32.totalorder %s129, %s130
      %p144 = scmp.eq.s32.totalorder %s23, 1
      %p145 = por %p143, %p144
      %p147 = scmp.ne.s32.totalorder %s130, %s146
      %p148 = scmp.eq.s32.totalorder %s23, 0
      %p149 = por %p147, %p148
      %p150 = scmp.le.s32.totalorder 1, %s17
      %p151 = scmp.lt.s32.totalorder %s17, 3
      %p152 = pnand %p150, %p151
      %p153 = pneg %p152
      // Predicated region
      $region9: #{tpu_custom_call.1} parent=5 // pred_check
        _
      $region10: #{tpu_custom_call.1} parent=5 // pred_check_branch
        %155 = sbr.rel (%p152) target = $region12
      $region11: #{tpu_custom_call.1} parent=5 // pred_region
        %s156 = ssub.s32 %s17, 1
        // Predicated region
        $region13: #{tpu_custom_call.1} parent=11 // pred_check
          %p157 = pneg %p90
        $region14: #{tpu_custom_call.1} parent=11 // pred_check_branch
          %159 = sbr.rel (%p157) target = $region16
        $region15: #{tpu_custom_call.1} parent=11 // pred_region
          _
        $region16: #{tpu_custom_call.1} parent=11 // pred_fallthru
          _
      $region12: #{tpu_custom_call.1} parent=5 // pred_fallthru
        _
      %p160 = scmp.lt.s32.totalorder %s17, 2
      // Predicated region
      $region17: #{tpu_custom_call.1} parent=5 // pred_check
        %p161 = pneg %p160
      $region18: #{tpu_custom_call.1} parent=5 // pred_check_branch
        %163 = sbr.rel (%p161) target = $region20
      $region19: #{tpu_custom_call.1} parent=5 // pred_region
        // Predicated region
        $region21: #{tpu_custom_call.1} parent=19 // pred_check
          %p164 = pneg %p37
        $region22: #{tpu_custom_call.1} parent=19 // pred_check_branch
          %166 = sbr.rel (%p164) target = $region24
        $region23: #{tpu_custom_call.1} parent=19 // pred_region
          %p167 = scmp.lt.s32.totalorder %s17, 1
          %s168 = scalar_select %p167, %s17, 1
          %s169 = scalar_lea.vmem %s0, %s168
        $region24: #{tpu_custom_call.1} parent=19 // pred_fallthru
          _
        // Predicated region
        $region25: #{tpu_custom_call.1} parent=19 // pred_check
          %p170 = pneg %p63
        $region26: #{tpu_custom_call.1} parent=19 // pred_check_branch
          %172 = sbr.rel (%p170) target = $region28
        $region27: #{tpu_custom_call.1} parent=19 // pred_region
          %s173 = smul.u32 16, %s17
          %p174 = scmp.lt.s32.totalorder %s173, 31
          %s175 = scalar_select %p174, %s173, 31
          %s176 = smul.addr %s175, 4
          %s177 = scalar_lea.vmem %s1, %s176
          %s178 = smul.u32 16, %s17
        $region28: #{tpu_custom_call.1} parent=19 // pred_fallthru
          _
      $region20: #{tpu_custom_call.1} parent=5 // pred_fallthru
        _
      %p179 = scmp.le.s32.totalorder 1, %s17
      %p180 = scmp.lt.s32.totalorder %s17, 3
      %p181 = pnand %p179, %p180
      %p182 = pneg %p181
      // Predicated region
      $region29: #{tpu_custom_call.1} parent=5 // pred_check
        _
      $region30: #{tpu_custom_call.1} parent=5 // pred_check_branch
        %184 = sbr.rel (%p181) target = $region32
      $region31: #{tpu_custom_call.1} parent=5 // pred_region
        %s185 = ssub.s32 %s17, 1
        %p186 = scmp.lt.s32.totalorder %s22, 1
        %s187 = scalar_select %p186, %s22, 1
        %s188 = scalar_lea.vmem %s0, %s187
        %p189 = pneg %p43
        %p190 = pneg %p40
        %s191 = smul.u32 16, %s22
        %p192 = scmp.lt.s32.totalorder %s191, 31
        %s193 = scalar_select %p192, %s191, 31
        %s194 = smul.addr %s193, 4
        %s195 = scalar_lea.vmem %s1, %s194
        %p196 = pneg %p69
        %p197 = pneg %p66
        %p198 = pneg %p90
        %p199 = pneg %p87
        %p200 = pneg %p116
        %p201 = pneg %p113
        %s202 = sand.u32 %s103, 1
        %s203 = scalar_lea.sflag [#allocation3], %s202
        %s204 = sand.u32 %s103, 1
        %s205 = scalar_lea.vmem [#allocation2], %s204
        %p206 = pneg %p142
        %p207 = pneg %p139
        %s208 = sand.u32 %s129, 1
        %s209 = scalar_lea.sflag [#allocation5], %s208
        %s210 = sand.u32 %s129, 1
        %s211 = smul.addr %s210, 8
        %s212 = scalar_lea.vmem [#allocation4], %s211
        %p213 = scmp.lt.s32.totalorder %s22, 1
        %s214 = scalar_select %p213, %s22, 1
        %s215 = scalar_lea.vmem %s0, %s214
        %s216 = smul.u32 16, %s22
        %p217 = scmp.lt.s32.totalorder %s216, 31
        %s218 = scalar_select %p217, %s216, 31
        %s219 = smul.addr %s218, 4
        %s220 = scalar_lea.vmem %s1, %s219
        %s221 = smul.u32 16, %s22
        %v222 = vld [vmem:[%s220] sm:$0xf]
        %v223 = vld [vmem:[%s220 + $0x4] sm:$0xf]
        %v224 = vld [vmem:[%s220 + $0x8] sm:$0xf]
        %v225 = vld [vmem:[%s220 + $0xc] sm:$0xf]
        %v226 = vld [vmem:[%s220 + $0x10] sm:$0xf]
        %v227 = vld [vmem:[%s220 + $0x14] sm:$0xf]
        %v228 = vld [vmem:[%s220 + $0x18] sm:$0xf]
        %v229 = vld [vmem:[%s220 + $0x1c] sm:$0xf]
        %v230 = vld [vmem:[%s220 + $0x20] sm:$0xf]
        %v231 = vld [vmem:[%s220 + $0x24] sm:$0xf]
        %v232 = vld [vmem:[%s220 + $0x28] sm:$0xf]
        %v233 = vld [vmem:[%s220 + $0x2c] sm:$0xf]
        %v234 = vld [vmem:[%s220 + $0x30] sm:$0xf]
        %v235 = vld [vmem:[%s220 + $0x34] sm:$0xf]
        %v236 = vld [vmem:[%s220 + $0x38] sm:$0xf]
        %v237 = vld [vmem:[%s220 + $0x3c] sm:$0xf]
        %v238 = vld [vmem:[%s2] sm:$0x3]
        %v255 = vunpack.c.l.b16 %v222
        %v256 = vunpack.c.l.b16 %v223
        %v257 = vunpack.c.l.b16 %v224
        %v258 = vunpack.c.l.b16 %v225
        %v259 = vunpack.c.l.b16 %v226
        %v260 = vunpack.c.l.b16 %v227
        %v261 = vunpack.c.l.b16 %v228
        %v262 = vunpack.c.l.b16 %v229
        %v263 = vunpack.c.l.b16 %v230
        %v264 = vunpack.c.l.b16 %v231
        %v265 = vunpack.c.l.b16 %v232
        %v266 = vunpack.c.l.b16 %v233
        %v267 = vunpack.c.l.b16 %v234
        %v268 = vunpack.c.l.b16 %v235
        %v269 = vunpack.c.l.b16 %v236
        %v270 = vunpack.c.l.b16 %v237
        %v271 = vpack.c.b16 %v256, %v255
        %v272 = vpack.c.b16 %v258, %v257
        %v273 = vpack.c.b16 %v260, %v259
        %v274 = vpack.c.b16 %v262, %v261
        %v275 = vpack.c.b16 %v264, %v263
        %v276 = vpack.c.b16 %v266, %v265
        %v277 = vpack.c.b16 %v268, %v267
        %v278 = vpack.c.b16 %v270, %v269
        %vm279 = vcmask 130048
        %v281 = vsel %vm279, %v238, 0
        %v284 = vsel %vm279, %v271, 0
        %v287 = vsel %vm279, %v272, 0
        %v290 = vsel %vm279, %v273, 0
        %v293 = vsel %vm279, %v274, 0
        %v296 = vsel %vm279, %v275, 0
        %v299 = vsel %vm279, %v276, 0
        %v302 = vsel %vm279, %v277, 0
        %v305 = vsel %vm279, %v278, 0
        %307 = vmatpush.bf16.xpose.msra.mxu0 %v305
        %308 = vmatpush.bf16.xpose.msra.mxu0 %v302
        %309 = vmatpush.bf16.xpose.msra.mxu0 %v299
        %310 = vmatpush.bf16.xpose.msra.mxu0 %v296
        %311 = vmatpush.bf16.xpose.msra.mxu0 %v293
        %312 = vmatpush.bf16.xpose.msra.mxu0 %v290
        %313 = vmatpush.bf16.xpose.msra.mxu0 %v287
        %314 = vmatpush.bf16.xpose.msra.mxu0 %v284
        %315 = vmatmul.bf16.gmra.mxu0 %v281
        %v316 = vpop.f32.mrf.mxu0
        %v317 = vadd.f32 0.0, %v316
        %v318 = vpop.f32.mrf.mxu0
        %319 = vdwg.mxu0
        %v321 = vrot.slane %v317, 1
        %v323 = vadd.f32 %v317, %v321
        %v324 = vxor.u32 %v323, 2147483648
        %v325 = vmul.f32 %v324, 1.442695
        %v326 = vpow.pop %v325
        %v327 = vadd.f32 %v326, 1.0
        %v328 = vrcp.pop %v327
        %v329 = vmul.f32 %v327, %v328
        %v330 = vsub.f32 1.0, %v329
        %v331 = vmul.f32 %v328, %v330
        %v332 = vadd.f32 %v328, %v331
        %vm333 = vweird.f32 %v327
        %vm334 = vweird.f32 %v328
        %vm335 = vmor %vm333, %vm334
        %v336 = vsel %vm335, %v328, %v332
        %v337 = vand.u32 2147483647, %v327
        %vm338 = vcmp.eq.f32.partialorder %v337, 8.507059e+37
        %v339 = vand.u32 %v327, 2147483648
        %v340 = vor.u32 1.1754944e-38, %v339
        %v341 = vsel %vm338, %v340, %v336
        %v342 = vmul.f32 1.0, %v341
        %v343 = vld [vmem:[%s215] sm:$0x1]
        %v344 = vmul.f32 %v342, %v343
        %345 = vst [vmem:[%s205] sm:$0x1] %v344
        %vm346 = vcmask 1040384
        %v347 = vsel %vm346, %v342, 0.0
        %348 = vadd.xlane.f32.xlu0 %v347
        %v349 = vpop.xlane.xlu0 %348
        %v350 = vrot.slane %v349, 4
        %v351 = vadd.f32 %v349, %v350
        %v352 = vrot.slane %v351, 2
        %v353 = vadd.f32 %v351, %v352
        %v354 = vrot.slane %v353, 1
        %v355 = vadd.f32 %v353, %v354
        %s356 = vtos %v355
        %v357 = vrot.slane %v317, 2
        %v359 = vsel %vm346, %v357, 0.0
        %360 = vadd.xlane.f32.xlu0 %v359
        %v361 = vpop.xlane.xlu0 %360
        %v362 = vrot.slane %v361, 4
        %v363 = vadd.f32 %v361, %v362
        %v364 = vrot.slane %v363, 2
        %v365 = vadd.f32 %v363, %v364
        %v366 = vrot.slane %v365, 1
        %v367 = vadd.f32 %v365, %v366
        %s368 = vtos %v367
        %v369 = vlaneseq
        %v370 = vshrl.u32 %v369, 7
        %vm371 = vcmp.eq.s32.totalorder %v370, 0
        %vm372 = vcmp.eq.s32.totalorder %v370, 1
        %v373 = vstv %s368
        %v374 = vsel %vm372, %v373, 0.0
        %v375 = vstv %s356
        %v376 = vsel %vm371, %v375, %v374
        %377 = vst [vmem:[%s212] sm:$0xff] %v376
        %s378 = sand.u32 %s103, 1
        %s379 = scalar_lea.sflag [#allocation3], %s378
        %s380 = sand.u32 %s103, 1
        %s381 = scalar_lea.vmem [#allocation2], %s380
        %s382 = sand.u32 %s129, 1
        %s383 = scalar_lea.sflag [#allocation5], %s382
        %s384 = sand.u32 %s129, 1
        %s385 = smul.addr %s384, 8
        %s386 = scalar_lea.vmem [#allocation4], %s385
        // Predicated region
        $region33: #{tpu_custom_call.1} parent=31 // pred_check
          %p387 = pneg %p113
        $region34: #{tpu_custom_call.1} parent=31 // pred_check_branch
          %389 = sbr.rel (%p387) target = $region36
        $region35: #{tpu_custom_call.1} parent=31 // pred_region
          %391 = vsyncadd %s379, 0
          %s392 = scalar_lea.hbm %s3, %s22
          %s394 = sshll.u32 %s381, 4
          %s395 = int_to_ptr.vmem [resolvable:$true] %s394
          %s396 = sshll.u32 %s392, 4
          %s397 = int_to_ptr.hbm [resolvable:$true] %s396
          %399 = dma.vmem_to_hbm [thread:$0]  %s395, 16, %s397, %s379
        $region36: #{tpu_custom_call.1} parent=31 // pred_fallthru
          _
        // Predicated region
        $region37: #{tpu_custom_call.1} parent=31 // pred_check
          %p400 = pneg %p139
        $region38: #{tpu_custom_call.1} parent=31 // pred_check_branch
          %402 = sbr.rel (%p400) target = $region40
        $region39: #{tpu_custom_call.1} parent=31 // pred_region
          %404 = vsyncadd %s383, 0
          %s405 = smul.addr %s22, 8
          %s406 = scalar_lea.hbm %s4, %s405
          %s408 = sshll.u32 %s386, 4
          %s409 = int_to_ptr.vmem [resolvable:$true] %s408
          %s410 = sshll.u32 %s406, 4
          %s411 = int_to_ptr.hbm [resolvable:$true] %s410
          %413 = dma.vmem_to_hbm [thread:$0]  %s409, 128, %s411, %s383
        $region40: #{tpu_custom_call.1} parent=31 // pred_fallthru
          _
      $region32: #{tpu_custom_call.1} parent=5 // pred_fallthru
        _
      %p414 = scmp.le.s32.totalorder 2, %s17
      // Predicated region
      $region41: #{tpu_custom_call.1} parent=5 // pred_check
        %p415 = pneg %p414
      $region42: #{tpu_custom_call.1} parent=5 // pred_check_branch
        %417 = sbr.rel (%p415) target = $region44
      $region43: #{tpu_custom_call.1} parent=5 // pred_region
        %s418 = ssub.s32 %s17, 2
        // Predicated region
        $region45: #{tpu_custom_call.1} parent=43 // pred_check
          %p419 = pneg %p119
        $region46: #{tpu_custom_call.1} parent=43 // pred_check_branch
          %421 = sbr.rel (%p419) target = $region48
        $region47: #{tpu_custom_call.1} parent=43 // pred_region
          %s422 = sand.u32 %s104, 1
          %s423 = scalar_lea.sflag [#allocation3], %s422
          %s424 = sand.u32 %s104, 1
          %s425 = scalar_lea.vmem [#allocation2], %s424
          %427 = dma.done %s423, 16
        $region48: #{tpu_custom_call.1} parent=43 // pred_fallthru
          _
        // Predicated region
        $region49: #{tpu_custom_call.1} parent=43 // pred_check
          %p428 = pneg %p145
        $region50: #{tpu_custom_call.1} parent=43 // pred_check_branch
          %430 = sbr.rel (%p428) target = $region52
        $region51: #{tpu_custom_call.1} parent=43 // pred_region
          %s431 = sand.u32 %s130, 1
          %s432 = scalar_lea.sflag [#allocation5], %s431
          %s433 = sand.u32 %s130, 1
          %s434 = smul.addr %s433, 8
          %s435 = scalar_lea.vmem [#allocation4], %s434
          %437 = dma.done %s432, 128
        $region52: #{tpu_custom_call.1} parent=43 // pred_fallthru
          _
      $region44: #{tpu_custom_call.1} parent=5 // pred_fallthru
        _
    $region6: #{tpu_custom_call.1} parent=1 // loop_footer
      %s21 = sadd.s32 1, %s17
    $region7: #{tpu_custom_call.1} parent=1 // loop_footer_branch
      %16 = sbr.rel target = $region3
    $region8: #{tpu_custom_call.1} parent=1 // loop_exit
      _
    %438 = vsyncpa [#allocation3], 1
    %s439 = scalar_lea.sflag [#allocation3], 1
    %440 = vsyncpa %s439, 1
    %441 = vsyncpa [#allocation5], 1
    %s442 = scalar_lea.sflag [#allocation5], 1
    %443 = vsyncpa %s442, 1

</llo_original>
